<compile_context>
chip_gen: v7x
topology: tpu7x:2x2x1
jax: 0.10.0
libtpu: 0.0.40
codegen_flags: <defaults>
</compile_context>

<pallas_src>
import functools

import jax
import jax.numpy as jnp
from jax.experimental import pallas as pl
from jax.experimental.pallas import tpu as pltpu

HIDDEN = (128, 64, 32)
TILE_B = 512  # batch tile used when B > TILE_B; otherwise single full block


def _critic_kernel(s_ref, a_ref,
                   w1s_ref, w1a_ref, b1_ref,
                   w2_ref, b2_ref,
                   w3_ref, b3_ref,
                   w4_ref, b4_ref,
                   q1_ref, q2_ref):
    # Layer 1: x = [state | action] computed as two partial matmuls so the
    # wrapper never materializes the concatenated input.
    h = jnp.dot(s_ref[...], w1s_ref[...], preferred_element_type=jnp.float32)
    h = h + jnp.dot(a_ref[...], w1a_ref[...], preferred_element_type=jnp.float32)
    h = jnp.maximum(h + b1_ref[...], 0.0)                                  # (tile, 256)

    # Layers 2-4: Q1/Q2 fused via block-diagonal weights -> one matmul each.
    h = jnp.maximum(
        jnp.dot(h, w2_ref[...], preferred_element_type=jnp.float32) + b2_ref[...], 0.0
    )                                                                       # (tile, 128)
    h = jnp.maximum(
        jnp.dot(h, w3_ref[...], preferred_element_type=jnp.float32) + b3_ref[...], 0.0
    )                                                                       # (tile, 64)
    q = jnp.dot(h, w4_ref[...], preferred_element_type=jnp.float32) + b4_ref[...]  # (tile, 2)

    q1_ref[...] = q[:, 0:1]
    q2_ref[...] = q[:, 1:2]


def _block_diag(a, b):
    top = jnp.concatenate([a, jnp.zeros((a.shape[0], b.shape[1]), a.dtype)], axis=1)
    bot = jnp.concatenate([jnp.zeros((b.shape[0], a.shape[1]), b.dtype), b], axis=1)
    return jnp.concatenate([top, bot], axis=0)


def fuse_params(q1_p, q2_p, vector_size):
    """Fuse the two 4-layer MLPs into one block-diagonal network (done once)."""
    (w1_1, b1_1), (w2_1, b2_1), (w3_1, b3_1), (w4_1, b4_1) = q1_p
    (w1_2, b1_2), (w2_2, b2_2), (w3_2, b3_2), (w4_2, b4_2) = q2_p

    # layer 1: split input rows into state/action parts, concat heads on out-axis
    w1s = jnp.concatenate([w1_1[:vector_size], w1_2[:vector_size]], axis=1)   # (Vs, 256)
    w1a = jnp.concatenate([w1_1[vector_size:], w1_2[vector_size:]], axis=1)   # (Na, 256)
    b1 = jnp.concatenate([b1_1, b1_2], axis=1)                                # (1, 256)

    w2 = _block_diag(w2_1, w2_2)                                              # (256, 128)
    b2 = jnp.concatenate([b2_1, b2_2], axis=1)                                # (1, 128)
    w3 = _block_diag(w3_1, w3_2)                                              # (128, 64)
    b3 = jnp.concatenate([b3_1, b3_2], axis=1)                                # (1, 64)
    w4 = _block_diag(w4_1, w4_2)                                              # (64, 2)
    b4 = jnp.concatenate([b4_1, b4_2], axis=1)                                # (1, 2)

    return (w1s, w1a, b1, w2, b2, w3, b3, w4, b4)


def critic_forward(state, action, fused):
    """Returns (q1, q2), each (B, 1)."""
    state = state.astype(jnp.float32)
    action = action.astype(jnp.float32)
    B, Vs = state.shape
    Na = action.shape[1]

    # Batch tiling (rows are independent -> exact). Pad B up to a tile multiple.
    if B > TILE_B:
        tile = TILE_B
        pad = (-B) % tile
        if pad:
            state = jnp.pad(state, ((0, pad), (0, 0)))
            action = jnp.pad(action, ((0, pad), (0, 0)))
    else:
        tile = B
        pad = 0
    Bp = B + pad
    grid = (Bp // tile,)

    def full_block(arr):
        # parameters: whole array as one block, same block every grid step
        return pl.BlockSpec(arr.shape, lambda i: (0, 0))

    in_specs = [
        pl.BlockSpec((tile, Vs), lambda i: (i, 0)),
        pl.BlockSpec((tile, Na), lambda i: (i, 0)),
    ] + [full_block(p) for p in fused]

    out_specs = (
        pl.BlockSpec((tile, 1), lambda i: (i, 0)),
        pl.BlockSpec((tile, 1), lambda i: (i, 0)),
    )
    out_shape = (
        jax.ShapeDtypeStruct((Bp, 1), jnp.float32),
        jax.ShapeDtypeStruct((Bp, 1), jnp.float32),
    )

    q1, q2 = pl.pallas_call(
        _critic_kernel,
        grid=grid,
        in_specs=in_specs,
        out_specs=out_specs,
        out_shape=out_shape,
        compiler_params=pltpu.CompilerParams(dimension_semantics=("parallel",)),
    )(state, action, *fused)

    return q1[:B], q2[:B]


def init_critic_params(key, vector_size, num_actions):
    """PyTorch-style default init; weights stored as (in_features, out_features)."""
    in_size = vector_size + num_actions
    dims = [in_size] + list(HIDDEN) + [1]

    def make_net(k):
        layers = []
        ks = jax.random.split(k, len(dims) - 1)
        for i, kk in enumerate(ks):
            fan_in, fan_out = dims[i], dims[i + 1]
            kw, kb = jax.random.split(kk)
            bound = 1.0 / float(fan_in) ** 0.5
            w = jax.random.uniform(kw, (fan_in, fan_out), jnp.float32, -bound, bound)
            b = jax.random.uniform(kb, (1, fan_out), jnp.float32, -bound, bound)
            layers.append((w, b))
        return tuple(layers)

    k1, k2 = jax.random.split(key)
    return make_net(k1), make_net(k2)


def critic_ref(state, action, q1_p, q2_p):
    """Pure-JAX reference matching the PyTorch module."""
    x = jnp.concatenate([state, action], axis=1)

    def mlp(xx, p):
        h = xx
        for i, (w, b) in enumerate(p):
            h = h @ w + b
            if i < len(p) - 1:
                h = jnp.maximum(h, 0.0)
        return h

    return mlp(x, q1_p), mlp(x, q2_p)


if __name__ == "__main__":
    key = jax.random.PRNGKey(0)
    ks, ka, kp = jax.random.split(key, 3)

    B = 8
    VECTOR_SIZE = 16
    NUM_ACTIONS = 4

    state = jax.random.normal(ks, (B, VECTOR_SIZE), jnp.float32)
    action = jax.random.normal(ka, (B, NUM_ACTIONS), jnp.float32)

    q1_p, q2_p = init_critic_params(kp, VECTOR_SIZE, NUM_ACTIONS)
    fused = fuse_params(q1_p, q2_p, VECTOR_SIZE)

    fwd = jax.jit(critic_forward)
    q1, q2 = jax.block_until_ready(fwd(state, action, fused))

    assert q1.shape == (B, 1) and q2.shape == (B, 1)

    r1, r2 = critic_ref(state, action, q1_p, q2_p)
    assert bool(jnp.allclose(q1, r1, atol=1e-4, rtol=1e-4))
    assert bool(jnp.allclose(q2, r2, atol=1e-4, rtol=1e-4))

    print("KERNEL_OK")
</pallas_src>

<mosaic_0001>
module attributes {stable_mosaic.version = 11 : i64} {
  func.func @_critic_kernel(%arg0: i32, %arg1: memref<8x16xf32, #tpu.memory_space<vmem>>, %arg2: memref<8x4xf32, #tpu.memory_space<vmem>>, %arg3: memref<16x256xf32, #tpu.memory_space<vmem>>, %arg4: memref<4x256xf32, #tpu.memory_space<vmem>>, %arg5: memref<1x256xf32, #tpu.memory_space<vmem>>, %arg6: memref<256x128xf32, #tpu.memory_space<vmem>>, %arg7: memref<1x128xf32, #tpu.memory_space<vmem>>, %arg8: memref<128x64xf32, #tpu.memory_space<vmem>>, %arg9: memref<1x64xf32, #tpu.memory_space<vmem>>, %arg10: memref<64x2xf32, #tpu.memory_space<vmem>>, %arg11: memref<1x2xf32, #tpu.memory_space<vmem>>, %arg12: memref<8x1xf32, #tpu.memory_space<vmem>>, %arg13: memref<8x1xf32, #tpu.memory_space<vmem>>) attributes {dimension_semantics = [#tpu.dimension_semantics<parallel>], iteration_bounds = array<i64: 1>, scalar_prefetch = 0 : i64, scratch_operands = 0 : i64, tpu.core_type = #tpu.core_type<tc>, window_params = [{transform_indices = @transform_0, window_bounds = array<i64: 8, 16>}, {transform_indices = @transform_1, window_bounds = array<i64: 8, 4>}, {pipeline_mode = #tpu.pipeline_mode<synchronous>, transform_indices = @transform_2, window_bounds = array<i64: 16, 256>}, {pipeline_mode = #tpu.pipeline_mode<synchronous>, transform_indices = @transform_3, window_bounds = array<i64: 4, 256>}, {pipeline_mode = #tpu.pipeline_mode<synchronous>, transform_indices = @transform_4, window_bounds = array<i64: 1, 256>}, {pipeline_mode = #tpu.pipeline_mode<synchronous>, transform_indices = @transform_5, window_bounds = array<i64: 256, 128>}, {pipeline_mode = #tpu.pipeline_mode<synchronous>, transform_indices = @transform_6, window_bounds = array<i64: 1, 128>}, {pipeline_mode = #tpu.pipeline_mode<synchronous>, transform_indices = @transform_7, window_bounds = array<i64: 128, 64>}, {pipeline_mode = #tpu.pipeline_mode<synchronous>, transform_indices = @transform_8, window_bounds = array<i64: 1, 64>}, {pipeline_mode = #tpu.pipeline_mode<synchronous>, transform_indices = @transform_9, window_bounds = array<i64: 64, 2>}, {pipeline_mode = #tpu.pipeline_mode<synchronous>, transform_indices = @transform_10, window_bounds = array<i64: 1, 2>}, {transform_indices = @transform_11, window_bounds = array<i64: 8, 1>}, {transform_indices = @transform_12, window_bounds = array<i64: 8, 1>}]} {
    %c0 = arith.constant 0 : index
    %c0_0 = arith.constant 0 : index
    %0 = vector.load %arg1[%c0, %c0_0] : memref<8x16xf32, #tpu.memory_space<vmem>>, vector<8x16xf32>
    %c0_1 = arith.constant 0 : index
    %c0_2 = arith.constant 0 : index
    %1 = vector.load %arg3[%c0_1, %c0_2] : memref<16x256xf32, #tpu.memory_space<vmem>>, vector<16x256xf32>
    %cst = arith.constant dense<0.000000e+00> : vector<8x256xf32>
    %2 = tpu.matmul %0, %1, %cst {dimension_numbers = #tpu.dot_dimension_numbers<[1], [0], [0], [1], [0, 0, 1, 1], [], []>} : vector<8x16xf32>, vector<16x256xf32>, vector<8x256xf32> -> vector<8x256xf32>
    %c0_3 = arith.constant 0 : index
    %c0_4 = arith.constant 0 : index
    %3 = vector.load %arg2[%c0_3, %c0_4] : memref<8x4xf32, #tpu.memory_space<vmem>>, vector<8x4xf32>
    %c0_5 = arith.constant 0 : index
    %c0_6 = arith.constant 0 : index
    %4 = vector.load %arg4[%c0_5, %c0_6] : memref<4x256xf32, #tpu.memory_space<vmem>>, vector<4x256xf32>
    %cst_7 = arith.constant dense<0.000000e+00> : vector<8x256xf32>
    %5 = tpu.matmul %3, %4, %cst_7 {dimension_numbers = #tpu.dot_dimension_numbers<[1], [0], [0], [1], [0, 0, 1, 1], [], []>} : vector<8x4xf32>, vector<4x256xf32>, vector<8x256xf32> -> vector<8x256xf32>
    %6 = arith.addf %2, %5 : vector<8x256xf32>
    %c0_8 = arith.constant 0 : index
    %c0_9 = arith.constant 0 : index
    %7 = vector.load %arg5[%c0_8, %c0_9] : memref<1x256xf32, #tpu.memory_space<vmem>>, vector<1x256xf32>
    %8 = vector.broadcast %7 : vector<1x256xf32> to vector<8x256xf32>
    %9 = arith.addf %6, %8 : vector<8x256xf32>
    %cst_10 = arith.constant 0.000000e+00 : f32
    %10 = vector.broadcast %cst_10 : f32 to vector<8x256xf32>
    %11 = arith.maximumf %9, %10 : vector<8x256xf32>
    %c0_11 = arith.constant 0 : index
    %c0_12 = arith.constant 0 : index
    %12 = vector.load %arg6[%c0_11, %c0_12] : memref<256x128xf32, #tpu.memory_space<vmem>>, vector<256x128xf32>
    %cst_13 = arith.constant dense<0.000000e+00> : vector<8x128xf32>
    %13 = tpu.matmul %11, %12, %cst_13 {dimension_numbers = #tpu.dot_dimension_numbers<[1], [0], [0], [1], [0, 0, 1, 1], [], []>} : vector<8x256xf32>, vector<256x128xf32>, vector<8x128xf32> -> vector<8x128xf32>
    %c0_14 = arith.constant 0 : index
    %c0_15 = arith.constant 0 : index
    %14 = vector.load %arg7[%c0_14, %c0_15] : memref<1x128xf32, #tpu.memory_space<vmem>>, vector<1x128xf32>
    %15 = vector.broadcast %14 : vector<1x128xf32> to vector<8x128xf32>
    %16 = arith.addf %13, %15 : vector<8x128xf32>
    %cst_16 = arith.constant 0.000000e+00 : f32
    %17 = vector.broadcast %cst_16 : f32 to vector<8x128xf32>
    %18 = arith.maximumf %16, %17 : vector<8x128xf32>
    %c0_17 = arith.constant 0 : index
    %c0_18 = arith.constant 0 : index
    %19 = vector.load %arg8[%c0_17, %c0_18] : memref<128x64xf32, #tpu.memory_space<vmem>>, vector<128x64xf32>
    %cst_19 = arith.constant dense<0.000000e+00> : vector<8x64xf32>
    %20 = tpu.matmul %18, %19, %cst_19 {dimension_numbers = #tpu.dot_dimension_numbers<[1], [0], [0], [1], [0, 0, 1, 1], [], []>} : vector<8x128xf32>, vector<128x64xf32>, vector<8x64xf32> -> vector<8x64xf32>
    %c0_20 = arith.constant 0 : index
    %c0_21 = arith.constant 0 : index
    %21 = vector.load %arg9[%c0_20, %c0_21] : memref<1x64xf32, #tpu.memory_space<vmem>>, vector<1x64xf32>
    %22 = vector.broadcast %21 : vector<1x64xf32> to vector<8x64xf32>
    %23 = arith.addf %20, %22 : vector<8x64xf32>
    %cst_22 = arith.constant 0.000000e+00 : f32
    %24 = vector.broadcast %cst_22 : f32 to vector<8x64xf32>
    %25 = arith.maximumf %23, %24 : vector<8x64xf32>
    %c0_23 = arith.constant 0 : index
    %c0_24 = arith.constant 0 : index
    %26 = vector.load %arg10[%c0_23, %c0_24] : memref<64x2xf32, #tpu.memory_space<vmem>>, vector<64x2xf32>
    %cst_25 = arith.constant dense<0.000000e+00> : vector<8x2xf32>
    %27 = tpu.matmul %25, %26, %cst_25 {dimension_numbers = #tpu.dot_dimension_numbers<[1], [0], [0], [1], [0, 0, 1, 1], [], []>} : vector<8x64xf32>, vector<64x2xf32>, vector<8x2xf32> -> vector<8x2xf32>
    %c0_26 = arith.constant 0 : index
    %c0_27 = arith.constant 0 : index
    %28 = vector.load %arg11[%c0_26, %c0_27] : memref<1x2xf32, #tpu.memory_space<vmem>>, vector<1x2xf32>
    %29 = vector.broadcast %28 : vector<1x2xf32> to vector<8x2xf32>
    %30 = arith.addf %27, %29 : vector<8x2xf32>
    %31 = vector.extract_strided_slice %30 {offsets = [0, 0], sizes = [8, 1], strides = [1, 1]} : vector<8x2xf32> to vector<8x1xf32>
    %c0_28 = arith.constant 0 : index
    %c0_29 = arith.constant 0 : index
    %32 = vector.load %arg12[%c0_28, %c0_29] : memref<8x1xf32, #tpu.memory_space<vmem>>, vector<8x1xf32>
    tpu.vector_store %arg12[%c0_28, %c0_29], %31 {strides = array<i32>} : memref<8x1xf32, #tpu.memory_space<vmem>>, vector<8x1xf32>,
    %33 = vector.extract_strided_slice %30 {offsets = [0, 1], sizes = [8, 1], strides = [1, 1]} : vector<8x2xf32> to vector<8x1xf32>
    %c0_30 = arith.constant 0 : index
    %c0_31 = arith.constant 0 : index
    %34 = vector.load %arg13[%c0_30, %c0_31] : memref<8x1xf32, #tpu.memory_space<vmem>>, vector<8x1xf32>
    tpu.vector_store %arg13[%c0_30, %c0_31], %33 {strides = array<i32>} : memref<8x1xf32, #tpu.memory_space<vmem>>, vector<8x1xf32>,
    return
  }
  func.func @transform_0(%arg0: i32) -> (i32, i32) {
    %c0_i32 = arith.constant 0 : i32
    %c0_i32_0 = arith.constant 0 : i32
    return %arg0, %c0_i32 : i32, i32
  }
  func.func @transform_1(%arg0: i32) -> (i32, i32) {
    %c0_i32 = arith.constant 0 : i32
    %c0_i32_0 = arith.constant 0 : i32
    return %arg0, %c0_i32 : i32, i32
  }
  func.func @transform_2(%arg0: i32) -> (i32, i32) {
    %c0_i32 = arith.constant 0 : i32
    %c0_i32_0 = arith.constant 0 : i32
    %c0_i32_1 = arith.constant 0 : i32
    return %c0_i32, %c0_i32_0 : i32, i32
  }
  func.func @transform_3(%arg0: i32) -> (i32, i32) {
    %c0_i32 = arith.constant 0 : i32
    %c0_i32_0 = arith.constant 0 : i32
    %c0_i32_1 = arith.constant 0 : i32
    return %c0_i32, %c0_i32_0 : i32, i32
  }
  func.func @transform_4(%arg0: i32) -> (i32, i32) {
    %c0_i32 = arith.constant 0 : i32
    %c0_i32_0 = arith.constant 0 : i32
    %c0_i32_1 = arith.constant 0 : i32
    return %c0_i32, %c0_i32_0 : i32, i32
  }
  func.func @transform_5(%arg0: i32) -> (i32, i32) {
    %c0_i32 = arith.constant 0 : i32
    %c0_i32_0 = arith.constant 0 : i32
    %c0_i32_1 = arith.constant 0 : i32
    return %c0_i32, %c0_i32_0 : i32, i32
  }
  func.func @transform_6(%arg0: i32) -> (i32, i32) {
    %c0_i32 = arith.constant 0 : i32
    %c0_i32_0 = arith.constant 0 : i32
    %c0_i32_1 = arith.constant 0 : i32
    return %c0_i32, %c0_i32_0 : i32, i32
  }
  func.func @transform_7(%arg0: i32) -> (i32, i32) {
    %c0_i32 = arith.constant 0 : i32
    %c0_i32_0 = arith.constant 0 : i32
    %c0_i32_1 = arith.constant 0 : i32
    return %c0_i32, %c0_i32_0 : i32, i32
  }
  func.func @transform_8(%arg0: i32) -> (i32, i32) {
    %c0_i32 = arith.constant 0 : i32
    %c0_i32_0 = arith.constant 0 : i32
    %c0_i32_1 = arith.constant 0 : i32
    return %c0_i32, %c0_i32_0 : i32, i32
  }
  func.func @transform_9(%arg0: i32) -> (i32, i32) {
    %c0_i32 = arith.constant 0 : i32
    %c0_i32_0 = arith.constant 0 : i32
    %c0_i32_1 = arith.constant 0 : i32
    return %c0_i32, %c0_i32_0 : i32, i32
  }
  func.func @transform_10(%arg0: i32) -> (i32, i32) {
    %c0_i32 = arith.constant 0 : i32
    %c0_i32_0 = arith.constant 0 : i32
    %c0_i32_1 = arith.constant 0 : i32
    return %c0_i32, %c0_i32_0 : i32, i32
  }
  func.func @transform_11(%arg0: i32) -> (i32, i32) {
    %c0_i32 = arith.constant 0 : i32
    %c0_i32_0 = arith.constant 0 : i32
    return %arg0, %c0_i32 : i32, i32
  }
  func.func @transform_12(%arg0: i32) -> (i32, i32) {
    %c0_i32 = arith.constant 0 : i32
    %c0_i32_0 = arith.constant 0 : i32
    return %arg0, %c0_i32 : i32, i32
  }
}

</mosaic_0001>

<llo_original>
// kernel: critic_forward.1
$region0: #{critic_forward.1}
  #allocation0 [shape = 'u32[]', space=smem, size = 0x4, offset = 0x4, fixed_abs, tag = 'smem constant byte address 0x4 - core index']
  #allocation1 [shape = 'u32[144,128]{1,0:T(1,128)}', space=vmem, size = 0x12000, scoped, tag = 'internal scratch']
  %s0 = inlined_call_operand.hbm [shape: f32[8,16], index: 0, kind: input, shape index: {}]
  %s1 = inlined_call_operand.vmem [shape: f32[8,4], index: 1, kind: input, shape index: {}]
  %s2 = inlined_call_operand.vmem [shape: f32[16,256], index: 2, kind: input, shape index: {}]
  %s3 = inlined_call_operand.hbm [shape: f32[4,256], index: 3, kind: input, shape index: {}]
  %s4 = inlined_call_operand.hbm [shape: f32[1,256], index: 4, kind: input, shape index: {}]
  %s5 = inlined_call_operand.vmem [shape: f32[256,128], index: 5, kind: input, shape index: {}]
  %s6 = inlined_call_operand.vmem [shape: f32[1,128], index: 6, kind: input, shape index: {}]
  %s7 = inlined_call_operand.vmem [shape: f32[128,64], index: 7, kind: input, shape index: {}]
  %s8 = inlined_call_operand.vmem [shape: f32[1,64], index: 8, kind: input, shape index: {}]
  %s9 = inlined_call_operand.vmem [shape: f32[64,2], index: 9, kind: input, shape index: {}]
  %s10 = inlined_call_operand.vmem [shape: f32[1,2], index: 10, kind: input, shape index: {}]
  %s11 = inlined_call_operand.vmem [shape: f32[8,1], index: 11, kind: output, shape index: {0}]
  %s12 = inlined_call_operand.vmem [shape: f32[8,1], index: 12, kind: output, shape index: {1}]
  %13 = xla_tuple %s11, %s12
  %s14 = sld [smem:[#allocation0]]
  $region74: #{critic_forward.1} parent=0
    _
  %s16 = ssub.s32 1, %s14
  %s17 = scalar_select 0, %s16, %s14
  $region1: #{critic_forward.1} parent=0
    #allocation2 [shape = 'u8[4096]{0}', space=vmem, size = 0x1000, scoped, tag = 'input window, operand 0, single buffered']
    #allocation3 [shape = 's32[1]{0}', space=sflag, size = 0x4, scoped, tag = 'scoped memory for critic_forward.1']
    #allocation4 [shape = 'u8[4096]{0}', space=vmem, size = 0x1000, scoped, tag = 'input window, operand 3, single buffered']
    #allocation5 [shape = 's32[1]{0}', space=sflag, size = 0x4, scoped, tag = 'scoped memory for critic_forward.1']
    #allocation6 [shape = 'u8[1024]{0}', space=vmem, size = 0x400, scoped, tag = 'input window, operand 4, single buffered']
    %18 = vsyncpa [#allocation3], 0
    %19 = vsyncpa [#allocation5], 0
    // Predicated region
    $region2: #{critic_forward.1} parent=1 // pred_check
      _
    $region3: #{critic_forward.1} parent=1 // pred_check_branch
      %21 = sbr.rel (0) target = $region5
    $region4: #{critic_forward.1} parent=1 // pred_region
      %s23 = ssub.s32 128, 128
      %24 = vsyncadd [#allocation3], %s23
      %s26 = sshll.u32 [#allocation2], 4
      %s27 = int_to_ptr.vmem [resolvable:$true] %s26
      %29 = dma.hbm_to_vmem [thread:$0]  %s0, 128, %s27, [#allocation3]
    $region5: #{critic_forward.1} parent=1 // pred_fallthru
      _
    // Predicated region
    $region6: #{critic_forward.1} parent=1 // pred_check
      _
    $region7: #{critic_forward.1} parent=1 // pred_check_branch
      %31 = sbr.rel (0) target = $region9
    $region8: #{critic_forward.1} parent=1 // pred_region
      _
    $region9: #{critic_forward.1} parent=1 // pred_fallthru
      _
    // Predicated region
    $region10: #{critic_forward.1} parent=1 // pred_check
      _
    $region11: #{critic_forward.1} parent=1 // pred_check_branch
      %33 = sbr.rel (0) target = $region13
    $region12: #{critic_forward.1} parent=1 // pred_region
      _
    $region13: #{critic_forward.1} parent=1 // pred_fallthru
      _
    // Predicated region
    $region14: #{critic_forward.1} parent=1 // pred_check
      _
    $region15: #{critic_forward.1} parent=1 // pred_check_branch
      %35 = sbr.rel (0) target = $region17
    $region16: #{critic_forward.1} parent=1 // pred_region
      %s37 = ssub.s32 128, 128
      %38 = vsyncadd [#allocation5], %s37
      %s40 = sshll.u32 [#allocation4], 4
      %s41 = int_to_ptr.vmem [resolvable:$true] %s40
      %43 = dma.hbm_to_vmem [thread:$0]  %s3, 128, %s41, [#allocation5]
    $region17: #{critic_forward.1} parent=1 // pred_fallthru
      _
    // Predicated region
    $region18: #{critic_forward.1} parent=1 // pred_check
      _
    $region19: #{critic_forward.1} parent=1 // pred_check_branch
      %45 = sbr.rel (0) target = $region21
    $region20: #{critic_forward.1} parent=1 // pred_region
      %s47 = ssub.s32 32, 32
      %48 = vsyncadd [#allocation5], %s47
      %s50 = sshll.u32 [#allocation6], 4
      %s51 = int_to_ptr.vmem [resolvable:$true] %s50
      %53 = dma.hbm_to_vmem [thread:$0]  %s4, 32, %s51, [#allocation5]
    $region21: #{critic_forward.1} parent=1 // pred_fallthru
      _
    // Predicated region
    $region22: #{critic_forward.1} parent=1 // pred_check
      _
    $region23: #{critic_forward.1} parent=1 // pred_check_branch
      %55 = sbr.rel (0) target = $region25
    $region24: #{critic_forward.1} parent=1 // pred_region
      _
    $region25: #{critic_forward.1} parent=1 // pred_fallthru
      _
    // Predicated region
    $region26: #{critic_forward.1} parent=1 // pred_check
      _
    $region27: #{critic_forward.1} parent=1 // pred_check_branch
      %57 = sbr.rel (0) target = $region29
    $region28: #{critic_forward.1} parent=1 // pred_region
      _
    $region29: #{critic_forward.1} parent=1 // pred_fallthru
      _
    // Predicated region
    $region30: #{critic_forward.1} parent=1 // pred_check
      _
    $region31: #{critic_forward.1} parent=1 // pred_check_branch
      %59 = sbr.rel (0) target = $region33
    $region32: #{critic_forward.1} parent=1 // pred_region
      _
    $region33: #{critic_forward.1} parent=1 // pred_fallthru
      _
    // Predicated region
    $region34: #{critic_forward.1} parent=1 // pred_check
      _
    $region35: #{critic_forward.1} parent=1 // pred_check_branch
      %61 = sbr.rel (0) target = $region37
    $region36: #{critic_forward.1} parent=1 // pred_region
      _
    $region37: #{critic_forward.1} parent=1 // pred_fallthru
      _
    // Predicated region
    $region38: #{critic_forward.1} parent=1 // pred_check
      _
    $region39: #{critic_forward.1} parent=1 // pred_check_branch
      %63 = sbr.rel (0) target = $region41
    $region40: #{critic_forward.1} parent=1 // pred_region
      _
    $region41: #{critic_forward.1} parent=1 // pred_fallthru
      _
    // Predicated region
    $region42: #{critic_forward.1} parent=1 // pred_check
      _
    $region43: #{critic_forward.1} parent=1 // pred_check_branch
      %65 = sbr.rel (0) target = $region45
    $region44: #{critic_forward.1} parent=1 // pred_region
      _
    $region45: #{critic_forward.1} parent=1 // pred_fallthru
      _
    // Predicated region
    $region46: #{critic_forward.1} parent=1 // pred_check
      _
    $region47: #{critic_forward.1} parent=1 // pred_check_branch
      %67 = sbr.rel (0) target = $region49
    $region48: #{critic_forward.1} parent=1 // pred_region
      %68 = dma.done [#allocation3], 128
    $region49: #{critic_forward.1} parent=1 // pred_fallthru
      _
    // Predicated region
    $region50: #{critic_forward.1} parent=1 // pred_check
      _
    $region51: #{critic_forward.1} parent=1 // pred_check_branch
      %70 = sbr.rel (0) target = $region53
    $region52: #{critic_forward.1} parent=1 // pred_region
      %71 = dma.done [#allocation5], 128
    $region53: #{critic_forward.1} parent=1 // pred_fallthru
      _
    // Predicated region
    $region54: #{critic_forward.1} parent=1 // pred_check
      _
    $region55: #{critic_forward.1} parent=1 // pred_check_branch
      %73 = sbr.rel (0) target = $region57
    $region56: #{critic_forward.1} parent=1 // pred_region
      %74 = dma.done [#allocation5], 32
    $region57: #{critic_forward.1} parent=1 // pred_fallthru
      _
    %v75 = vld [vmem:[#allocation2] sm:$0xff]
    %v76 = vld [vmem:[%s2] sm:$0xff]
    %v77 = vld [vmem:[%s2 + $0x8] sm:$0xff]
    %v78 = vld [vmem:[%s2 + $0x10] sm:$0xff]
    %v79 = vld [vmem:[%s2 + $0x18] sm:$0xff]
    %v80 = vld [vmem:[%s1] sm:$0xff]
    %v81 = vld [vmem:[#allocation4] sm:$0xff]
    %v83 = vcombine.high %v81, %v81
    %vm84 = vcmask 31744
    %v86 = vsel %vm84, %v80, 0
    %vm88 = vcmask 1043456
    %v89 = vsel %vm88, %v81, 0
    %v91 = vsel %vm88, %v83, 0
    %93 = vmatprep.subr.mxu0 %v91
    %94 = vmatpush1.msra.mxu0 %v89
    %95 = vmatprep.subr.mxu0 0.0
    %96 = vmatpush1.msra.mxu0 0.0
    %97 = vmatprep.subr.mxu0 0.0
    %98 = vmatpush1.msra.mxu0 0.0
    %99 = vmatprep.subr.mxu0 0.0
    %100 = vmatpush1.msra.mxu0 0.0
    %101 = vmatprep.subr.mxu0 0.0
    %102 = vmatpush1.msra.mxu0 0.0
    %103 = vmatprep.subr.mxu0 0.0
    %104 = vmatpush1.msra.mxu0 0.0
    %105 = vmatprep.subr.mxu0 0.0
    %106 = vmatpush1.msra.mxu0 0.0
    %107 = vmatprep.subr.mxu0 0.0
    %108 = vmatpush1.msra.mxu0 0.0
    %109 = vmatprep.subr.mxu0 0.0
    %110 = vmatpush1.msra.mxu0 0.0
    %111 = vmatprep.subr.mxu0 0.0
    %112 = vmatpush1.msra.mxu0 0.0
    %113 = vmatprep.subr.mxu0 0.0
    %114 = vmatpush1.msra.mxu0 0.0
    %115 = vmatprep.subr.mxu0 0.0
    %116 = vmatpush1.msra.mxu0 0.0
    %117 = vmatprep.subr.mxu0 0.0
    %118 = vmatpush1.msra.mxu0 0.0
    %119 = vmatprep.subr.mxu0 0.0
    %120 = vmatpush1.msra.mxu0 0.0
    %121 = vmatprep.subr.mxu0 0.0
    %122 = vmatpush1.msra.mxu0 0.0
    %123 = vmatprep.subr.mxu0 0.0
    %124 = vmatpush1.msra.mxu0 0.0
    %125 = vmatprep.subr.mxu0 0.0
    %126 = vmatpush1.msra.mxu0 0.0
    %127 = vmatprep.subr.mxu0 0.0
    %128 = vmatpush1.msra.mxu0 0.0
    %129 = vmatprep.subr.mxu0 0.0
    %130 = vmatpush1.msra.mxu0 0.0
    %131 = vmatprep.subr.mxu0 0.0
    %132 = vmatpush1.msra.mxu0 0.0
    %133 = vmatprep.subr.mxu0 0.0
    %134 = vmatpush1.msra.mxu0 0.0
    %135 = vmatprep.subr.mxu0 0.0
    %136 = vmatpush1.msra.mxu0 0.0
    %137 = vmatprep.subr.mxu0 0.0
    %138 = vmatpush1.msra.mxu0 0.0
    %139 = vmatprep.subr.mxu0 0.0
    %140 = vmatpush1.msra.mxu0 0.0
    %141 = vmatprep.subr.mxu0 0.0
    %142 = vmatpush1.msra.mxu0 0.0
    %143 = vmatprep.subr.mxu0 0.0
    %144 = vmatpush1.msra.mxu0 0.0
    %145 = vmatprep.subr.mxu0 0.0
    %146 = vmatpush1.msra.mxu0 0.0
    %147 = vmatprep.subr.mxu0 0.0
    %148 = vmatpush1.msra.mxu0 0.0
    %149 = vmatprep.subr.mxu0 0.0
    %150 = vmatpush1.msra.mxu0 0.0
    %151 = vmatprep.subr.mxu0 0.0
    %152 = vmatpush1.msra.mxu0 0.0
    %153 = vmatprep.subr.mxu0 0.0
    %154 = vmatpush1.msra.mxu0 0.0
    %155 = vmatprep.subr.mxu0 0.0
    %156 = vmatpush1.msra.mxu0 0.0
    %157 = vmatprep.mubr.f32.mxu0 0.0
    %158 = vmatmul.mubr.f32.gmra.mrb[0].mxu0 %v86
    %v159 = vpop.f32.mrb[0].mxu0
    %v160 = vadd.f32 0.0, %v159
    %v161 = vpop.f32.mrb[0].mxu0
    %v162 = vadd.f32 0.0, %v161
    %163 = vdwg.mxu0
    %vm164 = vcmask 130048
    %v166 = vsel %vm164, %v75, 0
    %168 = vmatprep.subr.mxu0 %v77
    %169 = vmatpush1.msra.mxu0 %v76
    %170 = vmatprep.subr.mxu0 %v79
    %171 = vmatpush1.msra.mxu0 %v78
    %172 = vmatprep.subr.mxu0 0.0
    %173 = vmatpush1.msra.mxu0 0.0
    %174 = vmatprep.subr.mxu0 0.0
    %175 = vmatpush1.msra.mxu0 0.0
    %176 = vmatprep.subr.mxu0 0.0
    %177 = vmatpush1.msra.mxu0 0.0
    %178 = vmatprep.subr.mxu0 0.0
    %179 = vmatpush1.msra.mxu0 0.0
    %180 = vmatprep.subr.mxu0 0.0
    %181 = vmatpush1.msra.mxu0 0.0
    %182 = vmatprep.subr.mxu0 0.0
    %183 = vmatpush1.msra.mxu0 0.0
    %184 = vmatprep.subr.mxu0 0.0
    %185 = vmatpush1.msra.mxu0 0.0
    %186 = vmatprep.subr.mxu0 0.0
    %187 = vmatpush1.msra.mxu0 0.0
    %188 = vmatprep.subr.mxu0 0.0
    %189 = vmatpush1.msra.mxu0 0.0
    %190 = vmatprep.subr.mxu0 0.0
    %191 = vmatpush1.msra.mxu0 0.0
    %192 = vmatprep.subr.mxu0 0.0
    %193 = vmatpush1.msra.mxu0 0.0
    %194 = vmatprep.subr.mxu0 0.0
    %195 = vmatpush1.msra.mxu0 0.0
    %196 = vmatprep.subr.mxu0 0.0
    %197 = vmatpush1.msra.mxu0 0.0
    %198 = vmatprep.subr.mxu0 0.0
    %199 = vmatpush1.msra.mxu0 0.0
    %200 = vmatprep.subr.mxu0 0.0
    %201 = vmatpush1.msra.mxu0 0.0
    %202 = vmatprep.subr.mxu0 0.0
    %203 = vmatpush1.msra.mxu0 0.0
    %204 = vmatprep.subr.mxu0 0.0
    %205 = vmatpush1.msra.mxu0 0.0
    %206 = vmatprep.subr.mxu0 0.0
    %207 = vmatpush1.msra.mxu0 0.0
    %208 = vmatprep.subr.mxu0 0.0
    %209 = vmatpush1.msra.mxu0 0.0
    %210 = vmatprep.subr.mxu0 0.0
    %211 = vmatpush1.msra.mxu0 0.0
    %212 = vmatprep.subr.mxu0 0.0
    %213 = vmatpush1.msra.mxu0 0.0
    %214 = vmatprep.subr.mxu0 0.0
    %215 = vmatpush1.msra.mxu0 0.0
    %216 = vmatprep.subr.mxu0 0.0
    %217 = vmatpush1.msra.mxu0 0.0
    %218 = vmatprep.subr.mxu0 0.0
    %219 = vmatpush1.msra.mxu0 0.0
    %220 = vmatprep.subr.mxu0 0.0
    %221 = vmatpush1.msra.mxu0 0.0
    %222 = vmatprep.subr.mxu0 0.0
    %223 = vmatpush1.msra.mxu0 0.0
    %224 = vmatprep.subr.mxu0 0.0
    %225 = vmatpush1.msra.mxu0 0.0
    %226 = vmatprep.subr.mxu0 0.0
    %227 = vmatpush1.msra.mxu0 0.0
    %228 = vmatprep.subr.mxu0 0.0
    %229 = vmatpush1.msra.mxu0 0.0
    %230 = vmatprep.subr.mxu0 0.0
    %231 = vmatpush1.msra.mxu0 0.0
    %232 = vmatprep.mubr.f32.mxu0 0.0
    %233 = vmatmul.mubr.f32.gmra.mrb[0].mxu0 %v166
    %v234 = vpop.f32.mrb[0].mxu0
    %v235 = vadd.f32 %v160, %v234
    %v236 = vpop.f32.mrb[0].mxu0
    %v237 = vadd.f32 %v162, %v236
    %238 = vdwg.mxu0
    %v239 = vld [vmem:[#allocation6] sm:$0x3]
    %v241 = vlaneseq
    %v242 = vshrl.u32 %v241, 7
    %v243 = vsub.s32 0, %v242
    %v244 = vrot.slane %v239, %v243
    %v245 = vlaneseq
    %v246 = vshrl.u32 %v245, 7
    %v247 = vsub.s32 1, %v246
    %v248 = vrot.slane %v239, %v247
    %v251 = vadd.f32 %v235, %v244
    %v252 = vadd.f32 %v237, %v248
    %v253 = vmax.f32 %v251, 0.0
    %v254 = vmax.f32 %v252, 0.0
    %v255 = vld [vmem:[%s5] sm:$0xff]
    %v256 = vld [vmem:[%s5 + $0x8] sm:$0xff]
    %v257 = vld [vmem:[%s5 + $0x10] sm:$0xff]
    %v258 = vld [vmem:[%s5 + $0x18] sm:$0xff]
    %v259 = vld [vmem:[%s5 + $0x20] sm:$0xff]
    %v260 = vld [vmem:[%s5 + $0x28] sm:$0xff]
    %v261 = vld [vmem:[%s5 + $0x30] sm:$0xff]
    %v262 = vld [vmem:[%s5 + $0x38] sm:$0xff]
    %v263 = vld [vmem:[%s5 + $0x40] sm:$0xff]
    %v264 = vld [vmem:[%s5 + $0x48] sm:$0xff]
    %v265 = vld [vmem:[%s5 + $0x50] sm:$0xff]
    %v266 = vld [vmem:[%s5 + $0x58] sm:$0xff]
    %v267 = vld [vmem:[%s5 + $0x60] sm:$0xff]
    %v268 = vld [vmem:[%s5 + $0x68] sm:$0xff]
    %v269 = vld [vmem:[%s5 + $0x70] sm:$0xff]
    %v270 = vld [vmem:[%s5 + $0x78] sm:$0xff]
    %v271 = vld [vmem:[%s5 + $0x80] sm:$0xff]
    %v272 = vld [vmem:[%s5 + $0x88] sm:$0xff]
    %v273 = vld [vmem:[%s5 + $0x90] sm:$0xff]
    %v274 = vld [vmem:[%s5 + $0x98] sm:$0xff]
    %v275 = vld [vmem:[%s5 + $0xa0] sm:$0xff]
    %v276 = vld [vmem:[%s5 + $0xa8] sm:$0xff]
    %v277 = vld [vmem:[%s5 + $0xb0] sm:$0xff]
    %v278 = vld [vmem:[%s5 + $0xb8] sm:$0xff]
    %v279 = vld [vmem:[%s5 + $0xc0] sm:$0xff]
    %v280 = vld [vmem:[%s5 + $0xc8] sm:$0xff]
    %v281 = vld [vmem:[%s5 + $0xd0] sm:$0xff]
    %v282 = vld [vmem:[%s5 + $0xd8] sm:$0xff]
    %v283 = vld [vmem:[%s5 + $0xe0] sm:$0xff]
    %v284 = vld [vmem:[%s5 + $0xe8] sm:$0xff]
    %v285 = vld [vmem:[%s5 + $0xf0] sm:$0xff]
    %v286 = vld [vmem:[%s5 + $0xf8] sm:$0xff]
    %v287 = vld [vmem:[%s6] sm:$0x1]
    %v289 = vlaneseq
    %v290 = vshrl.u32 %v289, 7
    %v291 = vsub.s32 0, %v290
    %v292 = vrot.slane %v287, %v291
    %294 = vmatprep.subr.mxu0 0.0
    %295 = vmatpush1.msra.mxu0 %v255
    %296 = vmatprep.subr.mxu0 0.0
    %297 = vmatpush1.msra.mxu0 %v256
    %298 = vmatprep.subr.mxu0 0.0
    %299 = vmatpush1.msra.mxu0 %v257
    %300 = vmatprep.subr.mxu0 0.0
    %301 = vmatpush1.msra.mxu0 %v258
    %302 = vmatprep.subr.mxu0 0.0
    %303 = vmatpush1.msra.mxu0 %v259
    %304 = vmatprep.subr.mxu0 0.0
    %305 = vmatpush1.msra.mxu0 %v260
    %306 = vmatprep.subr.mxu0 0.0
    %307 = vmatpush1.msra.mxu0 %v261
    %308 = vmatprep.subr.mxu0 0.0
    %309 = vmatpush1.msra.mxu0 %v262
    %310 = vmatprep.subr.mxu0 0.0
    %311 = vmatpush1.msra.mxu0 %v263
    %312 = vmatprep.subr.mxu0 0.0
    %313 = vmatpush1.msra.mxu0 %v264
    %314 = vmatprep.subr.mxu0 0.0
    %315 = vmatpush1.msra.mxu0 %v265
    %316 = vmatprep.subr.mxu0 0.0
    %317 = vmatpush1.msra.mxu0 %v266
    %318 = vmatprep.subr.mxu0 0.0
    %319 = vmatpush1.msra.mxu0 %v267
    %320 = vmatprep.subr.mxu0 0.0
    %321 = vmatpush1.msra.mxu0 %v268
    %322 = vmatprep.subr.mxu0 0.0
    %323 = vmatpush1.msra.mxu0 %v269
    %324 = vmatprep.subr.mxu0 0.0
    %325 = vmatpush1.msra.mxu0 %v270
    %326 = vmatprep.subr.mxu0 0.0
    %327 = vmatpush1.msra.mxu0 %v271
    %328 = vmatprep.subr.mxu0 0.0
    %329 = vmatpush1.msra.mxu0 %v272
    %330 = vmatprep.subr.mxu0 0.0
    %331 = vmatpush1.msra.mxu0 %v273
    %332 = vmatprep.subr.mxu0 0.0
    %333 = vmatpush1.msra.mxu0 %v274
    %334 = vmatprep.subr.mxu0 0.0
    %335 = vmatpush1.msra.mxu0 %v275
    %336 = vmatprep.subr.mxu0 0.0
    %337 = vmatpush1.msra.mxu0 %v276
    %338 = vmatprep.subr.mxu0 0.0
    %339 = vmatpush1.msra.mxu0 %v277
    %340 = vmatprep.subr.mxu0 0.0
    %341 = vmatpush1.msra.mxu0 %v278
    %342 = vmatprep.subr.mxu0 0.0
    %343 = vmatpush1.msra.mxu0 %v279
    %344 = vmatprep.subr.mxu0 0.0
    %345 = vmatpush1.msra.mxu0 %v280
    %346 = vmatprep.subr.mxu0 0.0
    %347 = vmatpush1.msra.mxu0 %v281
    %348 = vmatprep.subr.mxu0 0.0
    %349 = vmatpush1.msra.mxu0 %v282
    %350 = vmatprep.subr.mxu0 0.0
    %351 = vmatpush1.msra.mxu0 %v283
    %352 = vmatprep.subr.mxu0 0.0
    %353 = vmatpush1.msra.mxu0 %v284
    %354 = vmatprep.subr.mxu0 0.0
    %355 = vmatpush1.msra.mxu0 %v285
    %356 = vmatprep.subr.mxu0 0.0
    %357 = vmatpush1.msra.mxu0 %v286
    %358 = vmatprep.mubr.f32.mxu0 %v254
    %359 = vmatmul.mubr.f32.gmra.mrb[0].mxu0 %v253
    %v360 = vpop.f32.mrb[0].mxu0
    %v361 = vadd.f32 %v292, %v360
    %v362 = vpop.f32.mrb[0].mxu0
    %363 = vdwg.mxu0
    %v364 = vmax.f32 %v361, 0.0
    %v365 = vld [vmem:[%s7] sm:$0xff]
    %v366 = vld [vmem:[%s7 + $0x8] sm:$0xff]
    %v367 = vld [vmem:[%s7 + $0x10] sm:$0xff]
    %v368 = vld [vmem:[%s7 + $0x18] sm:$0xff]
    %v369 = vld [vmem:[%s7 + $0x20] sm:$0xff]
    %v370 = vld [vmem:[%s7 + $0x28] sm:$0xff]
    %v371 = vld [vmem:[%s7 + $0x30] sm:$0xff]
    %v372 = vld [vmem:[%s7 + $0x38] sm:$0xff]
    %v373 = vld [vmem:[%s7 + $0x40] sm:$0xff]
    %v374 = vld [vmem:[%s7 + $0x48] sm:$0xff]
    %v375 = vld [vmem:[%s7 + $0x50] sm:$0xff]
    %v376 = vld [vmem:[%s7 + $0x58] sm:$0xff]
    %v377 = vld [vmem:[%s7 + $0x60] sm:$0xff]
    %v378 = vld [vmem:[%s7 + $0x68] sm:$0xff]
    %v379 = vld [vmem:[%s7 + $0x70] sm:$0xff]
    %v380 = vld [vmem:[%s7 + $0x78] sm:$0xff]
    %v381 = vld [vmem:[%s8] sm:$0x1]
    %v383 = vlaneseq
    %v384 = vshrl.u32 %v383, 7
    %v385 = vsub.s32 0, %v384
    %v386 = vrot.slane %v381, %v385
    %388 = vmatprep.subr.mxu0 0.0
    %389 = vmatpush1.msra.mxu0 %v365
    %390 = vmatprep.subr.mxu0 0.0
    %391 = vmatpush1.msra.mxu0 %v366
    %392 = vmatprep.subr.mxu0 0.0
    %393 = vmatpush1.msra.mxu0 %v367
    %394 = vmatprep.subr.mxu0 0.0
    %395 = vmatpush1.msra.mxu0 %v368
    %396 = vmatprep.subr.mxu0 0.0
    %397 = vmatpush1.msra.mxu0 %v369
    %398 = vmatprep.subr.mxu0 0.0
    %399 = vmatpush1.msra.mxu0 %v370
    %400 = vmatprep.subr.mxu0 0.0
    %401 = vmatpush1.msra.mxu0 %v371
    %402 = vmatprep.subr.mxu0 0.0
    %403 = vmatpush1.msra.mxu0 %v372
    %404 = vmatprep.subr.mxu0 0.0
    %405 = vmatpush1.msra.mxu0 %v373
    %406 = vmatprep.subr.mxu0 0.0
    %407 = vmatpush1.msra.mxu0 %v374
    %408 = vmatprep.subr.mxu0 0.0
    %409 = vmatpush1.msra.mxu0 %v375
    %410 = vmatprep.subr.mxu0 0.0
    %411 = vmatpush1.msra.mxu0 %v376
    %412 = vmatprep.subr.mxu0 0.0
    %413 = vmatpush1.msra.mxu0 %v377
    %414 = vmatprep.subr.mxu0 0.0
    %415 = vmatpush1.msra.mxu0 %v378
    %416 = vmatprep.subr.mxu0 0.0
    %417 = vmatpush1.msra.mxu0 %v379
    %418 = vmatprep.subr.mxu0 0.0
    %419 = vmatpush1.msra.mxu0 %v380
    %420 = vmatprep.subr.mxu0 0.0
    %421 = vmatpush1.msra.mxu0 0.0
    %422 = vmatprep.subr.mxu0 0.0
    %423 = vmatpush1.msra.mxu0 0.0
    %424 = vmatprep.subr.mxu0 0.0
    %425 = vmatpush1.msra.mxu0 0.0
    %426 = vmatprep.subr.mxu0 0.0
    %427 = vmatpush1.msra.mxu0 0.0
    %428 = vmatprep.subr.mxu0 0.0
    %429 = vmatpush1.msra.mxu0 0.0
    %430 = vmatprep.subr.mxu0 0.0
    %431 = vmatpush1.msra.mxu0 0.0
    %432 = vmatprep.subr.mxu0 0.0
    %433 = vmatpush1.msra.mxu0 0.0
    %434 = vmatprep.subr.mxu0 0.0
    %435 = vmatpush1.msra.mxu0 0.0
    %436 = vmatprep.subr.mxu0 0.0
    %437 = vmatpush1.msra.mxu0 0.0
    %438 = vmatprep.subr.mxu0 0.0
    %439 = vmatpush1.msra.mxu0 0.0
    %440 = vmatprep.subr.mxu0 0.0
    %441 = vmatpush1.msra.mxu0 0.0
    %442 = vmatprep.subr.mxu0 0.0
    %443 = vmatpush1.msra.mxu0 0.0
    %444 = vmatprep.subr.mxu0 0.0
    %445 = vmatpush1.msra.mxu0 0.0
    %446 = vmatprep.subr.mxu0 0.0
    %447 = vmatpush1.msra.mxu0 0.0
    %448 = vmatprep.subr.mxu0 0.0
    %449 = vmatpush1.msra.mxu0 0.0
    %450 = vmatprep.subr.mxu0 0.0
    %451 = vmatpush1.msra.mxu0 0.0
    %452 = vmatprep.mubr.f32.mxu0 0.0
    %453 = vmatmul.mubr.f32.gmra.mrb[0].mxu0 %v364
    %v454 = vpop.f32.mrb[0].mxu0
    %v455 = vadd.f32 %v386, %v454
    %v456 = vpop.f32.mrb[0].mxu0
    %457 = vdwg.mxu0
    %v458 = vmax.f32 %v455, 0.0
    %v459 = vld [vmem:[%s9] sm:$0xff]
    %v460 = vld [vmem:[%s9 + $0x8] sm:$0xff]
    %v461 = vld [vmem:[%s9 + $0x10] sm:$0xff]
    %v462 = vld [vmem:[%s9 + $0x18] sm:$0xff]
    %v463 = vld [vmem:[%s9 + $0x20] sm:$0xff]
    %v464 = vld [vmem:[%s9 + $0x28] sm:$0xff]
    %v465 = vld [vmem:[%s9 + $0x30] sm:$0xff]
    %v466 = vld [vmem:[%s9 + $0x38] sm:$0xff]
    %v467 = vld [vmem:[%s10] sm:$0x1]
    %v469 = vlaneseq
    %v470 = vshrl.u32 %v469, 7
    %v471 = vsub.s32 0, %v470
    %v472 = vrot.slane %v467, %v471
    %vm474 = vcmask 523264
    %v476 = vsel %vm474, %v458, 0
    %478 = vmatprep.subr.mxu0 0.0
    %479 = vmatpush1.msra.mxu0 %v459
    %480 = vmatprep.subr.mxu0 0.0
    %481 = vmatpush1.msra.mxu0 %v460
    %482 = vmatprep.subr.mxu0 0.0
    %483 = vmatpush1.msra.mxu0 %v461
    %484 = vmatprep.subr.mxu0 0.0
    %485 = vmatpush1.msra.mxu0 %v462
    %486 = vmatprep.subr.mxu0 0.0
    %487 = vmatpush1.msra.mxu0 %v463
    %488 = vmatprep.subr.mxu0 0.0
    %489 = vmatpush1.msra.mxu0 %v464
    %490 = vmatprep.subr.mxu0 0.0
    %491 = vmatpush1.msra.mxu0 %v465
    %492 = vmatprep.subr.mxu0 0.0
    %493 = vmatpush1.msra.mxu0 %v466
    %494 = vmatprep.subr.mxu0 0.0
    %495 = vmatpush1.msra.mxu0 0.0
    %496 = vmatprep.subr.mxu0 0.0
    %497 = vmatpush1.msra.mxu0 0.0
    %498 = vmatprep.subr.mxu0 0.0
    %499 = vmatpush1.msra.mxu0 0.0
    %500 = vmatprep.subr.mxu0 0.0
    %501 = vmatpush1.msra.mxu0 0.0
    %502 = vmatprep.subr.mxu0 0.0
    %503 = vmatpush1.msra.mxu0 0.0
    %504 = vmatprep.subr.mxu0 0.0
    %505 = vmatpush1.msra.mxu0 0.0
    %506 = vmatprep.subr.mxu0 0.0
    %507 = vmatpush1.msra.mxu0 0.0
    %508 = vmatprep.subr.mxu0 0.0
    %509 = vmatpush1.msra.mxu0 0.0
    %510 = vmatprep.subr.mxu0 0.0
    %511 = vmatpush1.msra.mxu0 0.0
    %512 = vmatprep.subr.mxu0 0.0
    %513 = vmatpush1.msra.mxu0 0.0
    %514 = vmatprep.subr.mxu0 0.0
    %515 = vmatpush1.msra.mxu0 0.0
    %516 = vmatprep.subr.mxu0 0.0
    %517 = vmatpush1.msra.mxu0 0.0
    %518 = vmatprep.subr.mxu0 0.0
    %519 = vmatpush1.msra.mxu0 0.0
    %520 = vmatprep.subr.mxu0 0.0
    %521 = vmatpush1.msra.mxu0 0.0
    %522 = vmatprep.subr.mxu0 0.0
    %523 = vmatpush1.msra.mxu0 0.0
    %524 = vmatprep.subr.mxu0 0.0
    %525 = vmatpush1.msra.mxu0 0.0
    %526 = vmatprep.subr.mxu0 0.0
    %527 = vmatpush1.msra.mxu0 0.0
    %528 = vmatprep.subr.mxu0 0.0
    %529 = vmatpush1.msra.mxu0 0.0
    %530 = vmatprep.subr.mxu0 0.0
    %531 = vmatpush1.msra.mxu0 0.0
    %532 = vmatprep.subr.mxu0 0.0
    %533 = vmatpush1.msra.mxu0 0.0
    %534 = vmatprep.subr.mxu0 0.0
    %535 = vmatpush1.msra.mxu0 0.0
    %536 = vmatprep.subr.mxu0 0.0
    %537 = vmatpush1.msra.mxu0 0.0
    %538 = vmatprep.subr.mxu0 0.0
    %539 = vmatpush1.msra.mxu0 0.0
    %540 = vmatprep.subr.mxu0 0.0
    %541 = vmatpush1.msra.mxu0 0.0
    %542 = vmatprep.mubr.f32.mxu0 0.0
    %543 = vmatmul.mubr.f32.gmra.mrb[0].mxu0 %v476
    %v544 = vpop.f32.mrb[0].mxu0
    %v545 = vadd.f32 %v472, %v544
    %v546 = vpop.f32.mrb[0].mxu0
    %547 = vdwg.mxu0
    %vm548 = vcmask 7168
    %549 = vst.msk [vmem:[%s11] sm:$0xff] %vm548, %v545
    %551 = vrot.lane.b32.xlu0 %v545, 127
    %v552 = vpop.permute.xlu0 %551
    %554 = vst.msk [vmem:[%s12] sm:$0xff] %vm548, %v552
    // Predicated region
    $region58: #{critic_forward.1} parent=1 // pred_check
      _
    $region59: #{critic_forward.1} parent=1 // pred_check_branch
      %556 = sbr.rel (0) target = $region61
    $region60: #{critic_forward.1} parent=1 // pred_region
      _
    $region61: #{critic_forward.1} parent=1 // pred_fallthru
      _
    // Predicated region
    $region62: #{critic_forward.1} parent=1 // pred_check
      _
    $region63: #{critic_forward.1} parent=1 // pred_check_branch
      %558 = sbr.rel (0) target = $region65
    $region64: #{critic_forward.1} parent=1 // pred_region
      _
    $region65: #{critic_forward.1} parent=1 // pred_fallthru
      _
    // Predicated region
    $region66: #{critic_forward.1} parent=1 // pred_check
      _
    $region67: #{critic_forward.1} parent=1 // pred_check_branch
      %560 = sbr.rel (0) target = $region69
    $region68: #{critic_forward.1} parent=1 // pred_region
      _
    $region69: #{critic_forward.1} parent=1 // pred_fallthru
      _
    // Predicated region
    $region70: #{critic_forward.1} parent=1 // pred_check
      _
    $region71: #{critic_forward.1} parent=1 // pred_check_branch
      %562 = sbr.rel (0) target = $region73
    $region72: #{critic_forward.1} parent=1 // pred_region
      _
    $region73: #{critic_forward.1} parent=1 // pred_fallthru
      _
    %563 = vsyncpa [#allocation3], 1
    %564 = vsyncpa [#allocation5], 1

</llo_original>
